<compile_context>
chip_gen: v5e
topology: v5e:2x2
jax: 0.10.0
libtpu: 0.0.40
codegen_flags: <defaults>
</compile_context>

<pallas_src>
import functools

import jax
import jax.numpy as jnp
from jax.experimental import pallas as pl
from jax.experimental.pallas import tpu as pltpu

NUM_IN = 2
NUM_OUT = 1
NUM_LAYERS = 6            # hidden->hidden blocks (matches torch default)
NUM_HIDDEN = 25

IN_PAD = 8                # input feature dim zero-padded to a sublane multiple
H_PAD = 32                # hidden dim zero-padded to a sublane multiple
OUT_PAD = 8               # output feature dim zero-padded to a sublane multiple
DEFAULT_BATCH_TILE = 1024  # multiple of 128; sweepable


def _round_up(x, m):
    return ((x + m - 1) // m) * m


def ann_kernel(x_ref, w_in_ref, b_in_ref, w_hid_ref, b_hid_ref,
               w_out_ref, b_out_ref, o_ref):
    # x_ref:     (IN_PAD, BT)      f32   (rows >= NUM_IN are zero padding)
    # w_in_ref:  (H_PAD, IN_PAD)   bf16  (padded rows/cols are zero)
    # b_in_ref:  (H_PAD, 1)        f32
    # w_hid_ref: (L, H_PAD, H_PAD) bf16
    # b_hid_ref: (L, H_PAD, 1)     f32
    # w_out_ref: (OUT_PAD, H_PAD)  bf16  (rows >= NUM_OUT are zero padding)
    # b_out_ref: (NUM_OUT, 1)      f32
    # o_ref:     (NUM_OUT, BT)     f32   -> lane-dense store

    # Input layer: bf16 MXU matmul, f32 accumulate, f32 bias + tanh.
    xb = x_ref[...].astype(jnp.bfloat16)
    h = jnp.tanh(
        jnp.dot(w_in_ref[...], xb, preferred_element_type=jnp.float32)
        + b_in_ref[...]
    )

    # Hidden layers (static unroll keeps MXU/EUP interleave visible to LLO).
    # Padded hidden rows stay exactly zero through every layer.
    for l in range(NUM_LAYERS):
        h = jnp.tanh(
            jnp.dot(w_hid_ref[l], h.astype(jnp.bfloat16),
                    preferred_element_type=jnp.float32)
            + b_hid_ref[l]
        )

    # Output layer (no activation); only row 0 of the padded result is real.
    out = jnp.dot(w_out_ref[...], h.astype(jnp.bfloat16),
                  preferred_element_type=jnp.float32)
    o_ref[...] = out[:NUM_OUT, :] + b_out_ref[...]


@functools.partial(jax.jit, static_argnames=("batch_tile",))
def ann_forward(x, params, *, batch_tile=DEFAULT_BATCH_TILE):
    """x: (n, NUM_IN) float32 -> (n, NUM_OUT) float32."""
    w_in, b_in, w_hid, b_hid, w_out, b_out = params
    x = x.astype(jnp.float32)
    n = x.shape[0]

    # Batch tile: large (amortise grid-step overhead, fill MXU M dim), but no
    # larger than the (128-rounded) batch; always a multiple of 128.
    bt = min(batch_tile, _round_up(max(n, 1), 128))
    n_pad = _round_up(n, bt)
    grid = (n_pad // bt,)

    # Layout plumbing in the wrapper: feature-major, zero-padded input slab.
    x_t = jnp.pad(x.T, ((0, IN_PAD - NUM_IN), (0, n_pad - n)))  # (IN_PAD, n_pad)

    out_t = pl.pallas_call(
        ann_kernel,
        out_shape=jax.ShapeDtypeStruct((NUM_OUT, n_pad), jnp.float32),
        grid=grid,
        in_specs=[
            pl.BlockSpec((IN_PAD, bt), lambda i: (0, i)),                 # x tile
            pl.BlockSpec((H_PAD, IN_PAD), lambda i: (0, 0)),              # W_in
            pl.BlockSpec((H_PAD, 1), lambda i: (0, 0)),                   # b_in
            pl.BlockSpec((NUM_LAYERS, H_PAD, H_PAD), lambda i: (0, 0, 0)),  # W_hid
            pl.BlockSpec((NUM_LAYERS, H_PAD, 1), lambda i: (0, 0, 0)),      # b_hid
            pl.BlockSpec((OUT_PAD, H_PAD), lambda i: (0, 0)),             # W_out
            pl.BlockSpec((NUM_OUT, 1), lambda i: (0, 0)),                 # b_out
        ],
        out_specs=pl.BlockSpec((NUM_OUT, bt), lambda i: (0, i)),          # lane-dense
        compiler_params=pltpu.CompilerParams(
            dimension_semantics=("parallel",)),
    )(x_t, w_in, b_in, w_hid, b_hid, w_out, b_out)

    return out_t[:, :n].T  # (n, NUM_OUT)


def init_params(key):
    """torch.nn.Linear-style init, PyTorch (out_features, in_features) layout."""
    ks = jax.random.split(key, 6)

    def uniform(k, shape, fan_in):
        bound = 1.0 / jnp.sqrt(jnp.float32(fan_in))
        return jax.random.uniform(k, shape, jnp.float32, -bound, bound)

    w_in = uniform(ks[0], (NUM_HIDDEN, NUM_IN), NUM_IN)
    b_in = uniform(ks[1], (NUM_HIDDEN,), NUM_IN)
    w_hid = uniform(ks[2], (NUM_LAYERS, NUM_HIDDEN, NUM_HIDDEN), NUM_HIDDEN)
    b_hid = uniform(ks[3], (NUM_LAYERS, NUM_HIDDEN), NUM_HIDDEN)
    w_out = uniform(ks[4], (NUM_OUT, NUM_HIDDEN), NUM_HIDDEN)
    b_out = uniform(ks[5], (NUM_OUT,), NUM_HIDDEN)
    return w_in, b_in, w_hid, b_hid, w_out, b_out


def prep_params(w_in, b_in, w_hid, b_hid, w_out, b_out):
    """One-time packing: pad tiny dims to sublane multiples, cast MXU operands
    to bf16, reshape biases to (features, 1) for the feature-major layout.
    All padding is zero so padded rows/cols stay inert (tanh(0)=0)."""
    w_in_p = jnp.zeros((H_PAD, IN_PAD), jnp.float32)
    w_in_p = w_in_p.at[:NUM_HIDDEN, :NUM_IN].set(w_in).astype(jnp.bfloat16)

    b_in_p = jnp.zeros((H_PAD, 1), jnp.float32)
    b_in_p = b_in_p.at[:NUM_HIDDEN, 0].set(b_in)

    w_hid_p = jnp.zeros((NUM_LAYERS, H_PAD, H_PAD), jnp.float32)
    w_hid_p = w_hid_p.at[:, :NUM_HIDDEN, :NUM_HIDDEN].set(w_hid).astype(jnp.bfloat16)

    b_hid_p = jnp.zeros((NUM_LAYERS, H_PAD, 1), jnp.float32)
    b_hid_p = b_hid_p.at[:, :NUM_HIDDEN, 0].set(b_hid)

    w_out_p = jnp.zeros((OUT_PAD, H_PAD), jnp.float32)
    w_out_p = w_out_p.at[:NUM_OUT, :NUM_HIDDEN].set(w_out).astype(jnp.bfloat16)

    b_out_p = b_out.reshape(NUM_OUT, 1).astype(jnp.float32)
    return w_in_p, b_in_p, w_hid_p, b_hid_p, w_out_p, b_out_p


def ann_reference_f32(x, w_in, b_in, w_hid, b_hid, w_out, b_out):
    """Pure f32 reference (PyTorch semantics)."""
    hp = jax.lax.Precision.HIGHEST
    h = jnp.tanh(jnp.dot(x, w_in.T, precision=hp) + b_in)
    for l in range(NUM_LAYERS):
        h = jnp.tanh(jnp.dot(h, w_hid[l].T, precision=hp) + b_hid[l])
    return jnp.dot(h, w_out.T, precision=hp) + b_out


def ann_reference_mixed(x, w_in, b_in, w_hid, b_hid, w_out, b_out):
    """Reference matching the kernel's numerics: bf16 MXU operands, f32 acc."""
    def mm(a, b):
        return jnp.dot(a.astype(jnp.bfloat16), b.astype(jnp.bfloat16),
                       preferred_element_type=jnp.float32)
    h = jnp.tanh(mm(x, w_in.T) + b_in)
    for l in range(NUM_LAYERS):
        h = jnp.tanh(mm(h, w_hid[l].T) + b_hid[l])
    return mm(h, w_out.T) + b_out


if __name__ == "__main__":
    key = jax.random.PRNGKey(0)
    k_x, k_p = jax.random.split(key)

    torch_params = init_params(k_p)
    kernel_params = prep_params(*torch_params)

    # Small primary case + a ragged multi-tile case to exercise the grid.
    for batch in (16, 3000):
        x = jax.random.normal(jax.random.fold_in(k_x, batch),
                              (batch, NUM_IN), jnp.float32)
        out = jax.block_until_ready(ann_forward(x, kernel_params))
        assert out.shape == (batch, NUM_OUT)

        ref_mixed = ann_reference_mixed(x, *torch_params)
        ref_f32 = ann_reference_f32(x, *torch_params)
        assert jnp.allclose(out, ref_mixed, atol=1e-3, rtol=1e-3), (
            f"mismatch vs bf16-matched reference (batch={batch})")
        assert float(jnp.max(jnp.abs(out - ref_f32))) < 0.1, (
            f"mismatch vs f32 reference (batch={batch})")

    print("KERNEL_OK")
</pallas_src>

<mosaic_0001>
module attributes {stable_mosaic.version = 11 : i64} {
  func.func @ann_kernel(%arg0: i32, %arg1: memref<8x128xf32, #tpu.memory_space<vmem>>, %arg2: memref<32x8xbf16, #tpu.memory_space<vmem>>, %arg3: memref<32x1xf32, #tpu.memory_space<vmem>>, %arg4: memref<6x32x32xbf16, #tpu.memory_space<vmem>>, %arg5: memref<6x32x1xf32, #tpu.memory_space<vmem>>, %arg6: memref<8x32xbf16, #tpu.memory_space<vmem>>, %arg7: memref<1x1xf32, #tpu.memory_space<vmem>>, %arg8: memref<1x128xf32, #tpu.memory_space<vmem>>) attributes {dimension_semantics = [#tpu.dimension_semantics<parallel>], iteration_bounds = array<i64: 1>, scalar_prefetch = 0 : i64, scratch_operands = 0 : i64, tpu.core_type = #tpu.core_type<tc>, window_params = [{transform_indices = @transform_0, window_bounds = array<i64: 8, 128>}, {pipeline_mode = #tpu.pipeline_mode<synchronous>, transform_indices = @transform_1, window_bounds = array<i64: 32, 8>}, {pipeline_mode = #tpu.pipeline_mode<synchronous>, transform_indices = @transform_2, window_bounds = array<i64: 32, 1>}, {pipeline_mode = #tpu.pipeline_mode<synchronous>, transform_indices = @transform_3, window_bounds = array<i64: 6, 32, 32>}, {pipeline_mode = #tpu.pipeline_mode<synchronous>, transform_indices = @transform_4, window_bounds = array<i64: 6, 32, 1>}, {pipeline_mode = #tpu.pipeline_mode<synchronous>, transform_indices = @transform_5, window_bounds = array<i64: 8, 32>}, {pipeline_mode = #tpu.pipeline_mode<synchronous>, transform_indices = @transform_6, window_bounds = array<i64: 1, 1>}, {transform_indices = @transform_7, window_bounds = array<i64: 1, 128>}]} {
    %c0 = arith.constant 0 : index
    %c0_0 = arith.constant 0 : index
    %0 = vector.load %arg1[%c0, %c0_0] : memref<8x128xf32, #tpu.memory_space<vmem>>, vector<8x128xf32>
    %1 = arith.truncf %0 : vector<8x128xf32> to vector<8x128xbf16>
    %c0_1 = arith.constant 0 : index
    %c0_2 = arith.constant 0 : index
    %2 = vector.load %arg2[%c0_1, %c0_2] : memref<32x8xbf16, #tpu.memory_space<vmem>>, vector<32x8xbf16>
    %cst = arith.constant dense<0.000000e+00> : vector<32x128xf32>
    %3 = tpu.matmul %2, %1, %cst {dimension_numbers = #tpu.dot_dimension_numbers<[1], [0], [0], [1], [0, 0, 1, 1], [], []>} : vector<32x8xbf16>, vector<8x128xbf16>, vector<32x128xf32> -> vector<32x128xf32>
    %c0_3 = arith.constant 0 : index
    %c0_4 = arith.constant 0 : index
    %4 = vector.load %arg3[%c0_3, %c0_4] : memref<32x1xf32, #tpu.memory_space<vmem>>, vector<32x1xf32>
    %5 = vector.broadcast %4 : vector<32x1xf32> to vector<32x128xf32>
    %6 = arith.addf %3, %5 : vector<32x128xf32>
    %7 = math.tanh %6 : vector<32x128xf32>
    %c0_5 = arith.constant 0 : index
    %c0_6 = arith.constant 0 : index
    %c0_7 = arith.constant 0 : index
    %8 = vector.load %arg4[%c0_5, %c0_6, %c0_7] : memref<6x32x32xbf16, #tpu.memory_space<vmem>>, vector<1x32x32xbf16>
    %9 = vector.shape_cast %8 : vector<1x32x32xbf16> to vector<32x32xbf16>
    %10 = arith.truncf %7 : vector<32x128xf32> to vector<32x128xbf16>
    %cst_8 = arith.constant dense<0.000000e+00> : vector<32x128xf32>
    %11 = tpu.matmul %9, %10, %cst_8 {dimension_numbers = #tpu.dot_dimension_numbers<[1], [0], [0], [1], [0, 0, 1, 1], [], []>} : vector<32x32xbf16>, vector<32x128xbf16>, vector<32x128xf32> -> vector<32x128xf32>
    %c0_9 = arith.constant 0 : index
    %c0_10 = arith.constant 0 : index
    %c0_11 = arith.constant 0 : index
    %12 = vector.load %arg5[%c0_9, %c0_10, %c0_11] : memref<6x32x1xf32, #tpu.memory_space<vmem>>, vector<1x32x1xf32>
    %13 = vector.shape_cast %12 : vector<1x32x1xf32> to vector<32x1xf32>
    %14 = vector.broadcast %13 : vector<32x1xf32> to vector<32x128xf32>
    %15 = arith.addf %11, %14 : vector<32x128xf32>
    %16 = math.tanh %15 : vector<32x128xf32>
    %c1 = arith.constant 1 : index
    %c0_12 = arith.constant 0 : index
    %c0_13 = arith.constant 0 : index
    %17 = vector.load %arg4[%c1, %c0_12, %c0_13] : memref<6x32x32xbf16, #tpu.memory_space<vmem>>, vector<1x32x32xbf16>
    %18 = vector.shape_cast %17 : vector<1x32x32xbf16> to vector<32x32xbf16>
    %19 = arith.truncf %16 : vector<32x128xf32> to vector<32x128xbf16>
    %cst_14 = arith.constant dense<0.000000e+00> : vector<32x128xf32>
    %20 = tpu.matmul %18, %19, %cst_14 {dimension_numbers = #tpu.dot_dimension_numbers<[1], [0], [0], [1], [0, 0, 1, 1], [], []>} : vector<32x32xbf16>, vector<32x128xbf16>, vector<32x128xf32> -> vector<32x128xf32>
    %c1_15 = arith.constant 1 : index
    %c0_16 = arith.constant 0 : index
    %c0_17 = arith.constant 0 : index
    %21 = vector.load %arg5[%c1_15, %c0_16, %c0_17] : memref<6x32x1xf32, #tpu.memory_space<vmem>>, vector<1x32x1xf32>
    %22 = vector.shape_cast %21 : vector<1x32x1xf32> to vector<32x1xf32>
    %23 = vector.broadcast %22 : vector<32x1xf32> to vector<32x128xf32>
    %24 = arith.addf %20, %23 : vector<32x128xf32>
    %25 = math.tanh %24 : vector<32x128xf32>
    %c2 = arith.constant 2 : index
    %c0_18 = arith.constant 0 : index
    %c0_19 = arith.constant 0 : index
    %26 = vector.load %arg4[%c2, %c0_18, %c0_19] : memref<6x32x32xbf16, #tpu.memory_space<vmem>>, vector<1x32x32xbf16>
    %27 = vector.shape_cast %26 : vector<1x32x32xbf16> to vector<32x32xbf16>
    %28 = arith.truncf %25 : vector<32x128xf32> to vector<32x128xbf16>
    %cst_20 = arith.constant dense<0.000000e+00> : vector<32x128xf32>
    %29 = tpu.matmul %27, %28, %cst_20 {dimension_numbers = #tpu.dot_dimension_numbers<[1], [0], [0], [1], [0, 0, 1, 1], [], []>} : vector<32x32xbf16>, vector<32x128xbf16>, vector<32x128xf32> -> vector<32x128xf32>
    %c2_21 = arith.constant 2 : index
    %c0_22 = arith.constant 0 : index
    %c0_23 = arith.constant 0 : index
    %30 = vector.load %arg5[%c2_21, %c0_22, %c0_23] : memref<6x32x1xf32, #tpu.memory_space<vmem>>, vector<1x32x1xf32>
    %31 = vector.shape_cast %30 : vector<1x32x1xf32> to vector<32x1xf32>
    %32 = vector.broadcast %31 : vector<32x1xf32> to vector<32x128xf32>
    %33 = arith.addf %29, %32 : vector<32x128xf32>
    %34 = math.tanh %33 : vector<32x128xf32>
    %c3 = arith.constant 3 : index
    %c0_24 = arith.constant 0 : index
    %c0_25 = arith.constant 0 : index
    %35 = vector.load %arg4[%c3, %c0_24, %c0_25] : memref<6x32x32xbf16, #tpu.memory_space<vmem>>, vector<1x32x32xbf16>
    %36 = vector.shape_cast %35 : vector<1x32x32xbf16> to vector<32x32xbf16>
    %37 = arith.truncf %34 : vector<32x128xf32> to vector<32x128xbf16>
    %cst_26 = arith.constant dense<0.000000e+00> : vector<32x128xf32>
    %38 = tpu.matmul %36, %37, %cst_26 {dimension_numbers = #tpu.dot_dimension_numbers<[1], [0], [0], [1], [0, 0, 1, 1], [], []>} : vector<32x32xbf16>, vector<32x128xbf16>, vector<32x128xf32> -> vector<32x128xf32>
    %c3_27 = arith.constant 3 : index
    %c0_28 = arith.constant 0 : index
    %c0_29 = arith.constant 0 : index
    %39 = vector.load %arg5[%c3_27, %c0_28, %c0_29] : memref<6x32x1xf32, #tpu.memory_space<vmem>>, vector<1x32x1xf32>
    %40 = vector.shape_cast %39 : vector<1x32x1xf32> to vector<32x1xf32>
    %41 = vector.broadcast %40 : vector<32x1xf32> to vector<32x128xf32>
    %42 = arith.addf %38, %41 : vector<32x128xf32>
    %43 = math.tanh %42 : vector<32x128xf32>
    %c4 = arith.constant 4 : index
    %c0_30 = arith.constant 0 : index
    %c0_31 = arith.constant 0 : index
    %44 = vector.load %arg4[%c4, %c0_30, %c0_31] : memref<6x32x32xbf16, #tpu.memory_space<vmem>>, vector<1x32x32xbf16>
    %45 = vector.shape_cast %44 : vector<1x32x32xbf16> to vector<32x32xbf16>
    %46 = arith.truncf %43 : vector<32x128xf32> to vector<32x128xbf16>
    %cst_32 = arith.constant dense<0.000000e+00> : vector<32x128xf32>
    %47 = tpu.matmul %45, %46, %cst_32 {dimension_numbers = #tpu.dot_dimension_numbers<[1], [0], [0], [1], [0, 0, 1, 1], [], []>} : vector<32x32xbf16>, vector<32x128xbf16>, vector<32x128xf32> -> vector<32x128xf32>
    %c4_33 = arith.constant 4 : index
    %c0_34 = arith.constant 0 : index
    %c0_35 = arith.constant 0 : index
    %48 = vector.load %arg5[%c4_33, %c0_34, %c0_35] : memref<6x32x1xf32, #tpu.memory_space<vmem>>, vector<1x32x1xf32>
    %49 = vector.shape_cast %48 : vector<1x32x1xf32> to vector<32x1xf32>
    %50 = vector.broadcast %49 : vector<32x1xf32> to vector<32x128xf32>
    %51 = arith.addf %47, %50 : vector<32x128xf32>
    %52 = math.tanh %51 : vector<32x128xf32>
    %c5 = arith.constant 5 : index
    %c0_36 = arith.constant 0 : index
    %c0_37 = arith.constant 0 : index
    %53 = vector.load %arg4[%c5, %c0_36, %c0_37] : memref<6x32x32xbf16, #tpu.memory_space<vmem>>, vector<1x32x32xbf16>
    %54 = vector.shape_cast %53 : vector<1x32x32xbf16> to vector<32x32xbf16>
    %55 = arith.truncf %52 : vector<32x128xf32> to vector<32x128xbf16>
    %cst_38 = arith.constant dense<0.000000e+00> : vector<32x128xf32>
    %56 = tpu.matmul %54, %55, %cst_38 {dimension_numbers = #tpu.dot_dimension_numbers<[1], [0], [0], [1], [0, 0, 1, 1], [], []>} : vector<32x32xbf16>, vector<32x128xbf16>, vector<32x128xf32> -> vector<32x128xf32>
    %c5_39 = arith.constant 5 : index
    %c0_40 = arith.constant 0 : index
    %c0_41 = arith.constant 0 : index
    %57 = vector.load %arg5[%c5_39, %c0_40, %c0_41] : memref<6x32x1xf32, #tpu.memory_space<vmem>>, vector<1x32x1xf32>
    %58 = vector.shape_cast %57 : vector<1x32x1xf32> to vector<32x1xf32>
    %59 = vector.broadcast %58 : vector<32x1xf32> to vector<32x128xf32>
    %60 = arith.addf %56, %59 : vector<32x128xf32>
    %61 = math.tanh %60 : vector<32x128xf32>
    %c0_42 = arith.constant 0 : index
    %c0_43 = arith.constant 0 : index
    %62 = vector.load %arg6[%c0_42, %c0_43] : memref<8x32xbf16, #tpu.memory_space<vmem>>, vector<8x32xbf16>
    %63 = arith.truncf %61 : vector<32x128xf32> to vector<32x128xbf16>
    %cst_44 = arith.constant dense<0.000000e+00> : vector<8x128xf32>
    %64 = tpu.matmul %62, %63, %cst_44 {dimension_numbers = #tpu.dot_dimension_numbers<[1], [0], [0], [1], [0, 0, 1, 1], [], []>} : vector<8x32xbf16>, vector<32x128xbf16>, vector<8x128xf32> -> vector<8x128xf32>
    %65 = vector.extract_strided_slice %64 {offsets = [0, 0], sizes = [1, 128], strides = [1, 1]} : vector<8x128xf32> to vector<1x128xf32>
    %c0_45 = arith.constant 0 : index
    %c0_46 = arith.constant 0 : index
    %66 = vector.load %arg7[%c0_45, %c0_46] : memref<1x1xf32, #tpu.memory_space<vmem>>, vector<1x1xf32>
    %67 = vector.broadcast %66 : vector<1x1xf32> to vector<1x128xf32>
    %68 = arith.addf %65, %67 : vector<1x128xf32>
    %c0_47 = arith.constant 0 : index
    %c0_48 = arith.constant 0 : index
    %69 = vector.load %arg8[%c0_47, %c0_48] : memref<1x128xf32, #tpu.memory_space<vmem>>, vector<1x128xf32>
    tpu.vector_store %arg8[%c0_47, %c0_48], %68 {strides = array<i32>} : memref<1x128xf32, #tpu.memory_space<vmem>>, vector<1x128xf32>,
    return
  }
  func.func @transform_0(%arg0: i32) -> (i32, i32) {
    %c0_i32 = arith.constant 0 : i32
    %c0_i32_0 = arith.constant 0 : i32
    return %c0_i32, %arg0 : i32, i32
  }
  func.func @transform_1(%arg0: i32) -> (i32, i32) {
    %c0_i32 = arith.constant 0 : i32
    %c0_i32_0 = arith.constant 0 : i32
    %c0_i32_1 = arith.constant 0 : i32
    return %c0_i32, %c0_i32_0 : i32, i32
  }
  func.func @transform_2(%arg0: i32) -> (i32, i32) {
    %c0_i32 = arith.constant 0 : i32
    %c0_i32_0 = arith.constant 0 : i32
    %c0_i32_1 = arith.constant 0 : i32
    return %c0_i32, %c0_i32_0 : i32, i32
  }
  func.func @transform_3(%arg0: i32) -> (i32, i32, i32) {
    %c0_i32 = arith.constant 0 : i32
    %c0_i32_0 = arith.constant 0 : i32
    %c0_i32_1 = arith.constant 0 : i32
    %c0_i32_2 = arith.constant 0 : i32
    return %c0_i32, %c0_i32_0, %c0_i32_1 : i32, i32, i32
  }
  func.func @transform_4(%arg0: i32) -> (i32, i32, i32) {
    %c0_i32 = arith.constant 0 : i32
    %c0_i32_0 = arith.constant 0 : i32
    %c0_i32_1 = arith.constant 0 : i32
    %c0_i32_2 = arith.constant 0 : i32
    return %c0_i32, %c0_i32_0, %c0_i32_1 : i32, i32, i32
  }
  func.func @transform_5(%arg0: i32) -> (i32, i32) {
    %c0_i32 = arith.constant 0 : i32
    %c0_i32_0 = arith.constant 0 : i32
    %c0_i32_1 = arith.constant 0 : i32
    return %c0_i32, %c0_i32_0 : i32, i32
  }
  func.func @transform_6(%arg0: i32) -> (i32, i32) {
    %c0_i32 = arith.constant 0 : i32
    %c0_i32_0 = arith.constant 0 : i32
    %c0_i32_1 = arith.constant 0 : i32
    return %c0_i32, %c0_i32_0 : i32, i32
  }
  func.func @transform_7(%arg0: i32) -> (i32, i32) {
    %c0_i32 = arith.constant 0 : i32
    %c0_i32_0 = arith.constant 0 : i32
    return %c0_i32, %arg0 : i32, i32
  }
}

</mosaic_0001>

<llo_original>
// kernel: ann_forward.1
$region0: #{ann_forward.1}
  #allocation0 [shape = 'u32[]', space=smem, size = 0x4, offset = 0x4, fixed_abs, tag = 'smem constant byte address 0x4 - core index']
  #allocation1 [shape = 'u32[72,128]{1,0:T(1,128)}', space=vmem, size = 0x9000, scoped, tag = 'internal scratch']
  #allocation2 [shape = 'f32[1,1]{1,0:T(1,128)S(1)}', space=vmem, size = 0x200, scoped, tag = 'scoped memory for ann_forward.1']
  %s0 = inlined_call_operand.vmem [shape: f32[8,128], index: 0, kind: input, shape index: {}]
  %s1 = inlined_call_operand.vmem [shape: bf16[32,8], index: 1, kind: input, shape index: {}]
  %s2 = inlined_call_operand.vmem [shape: f32[32,1], index: 2, kind: input, shape index: {}]
  %s3 = inlined_call_operand.vmem [shape: bf16[6,32,32], index: 3, kind: input, shape index: {}]
  %s4 = inlined_call_operand.vmem [shape: f32[6,32,1], index: 4, kind: input, shape index: {}]
  %s5 = inlined_call_operand.vmem [shape: bf16[8,32], index: 5, kind: input, shape index: {}]
  %s6 = inlined_call_operand.<no memory space> [shape: f32[1,1], index: 6, kind: input, shape index: {}]
  %s7 = inlined_call_operand.vmem [shape: f32[1,128], index: 7, kind: output, shape index: {}]
  %s8 = sld [smem:[#allocation0]]
  $region38: #{ann_forward.1} parent=0
    _
  %s10 = ssub.s32 1, %s8
  %s11 = scalar_select 0, %s10, %s8
  %v12 = vstv %s6
  %13 = vst [vmem:[#allocation2] sm:$0x1] %v12
  // Predicated region
  $region2: #{ann_forward.1} parent=0 // pred_check
    _
  $region3: #{ann_forward.1} parent=0 // pred_check_branch
    %15 = sbr.rel (0) target = $region5
  $region4: #{ann_forward.1} parent=0 // pred_region
    _
  $region5: #{ann_forward.1} parent=0 // pred_fallthru
    _
  // Predicated region
  $region6: #{ann_forward.1} parent=0 // pred_check
    _
  $region7: #{ann_forward.1} parent=0 // pred_check_branch
    %17 = sbr.rel (0) target = $region9
  $region8: #{ann_forward.1} parent=0 // pred_region
    _
  $region9: #{ann_forward.1} parent=0 // pred_fallthru
    _
  // Predicated region
  $region10: #{ann_forward.1} parent=0 // pred_check
    _
  $region11: #{ann_forward.1} parent=0 // pred_check_branch
    %19 = sbr.rel (0) target = $region13
  $region12: #{ann_forward.1} parent=0 // pred_region
    _
  $region13: #{ann_forward.1} parent=0 // pred_fallthru
    _
  // Predicated region
  $region14: #{ann_forward.1} parent=0 // pred_check
    _
  $region15: #{ann_forward.1} parent=0 // pred_check_branch
    %21 = sbr.rel (0) target = $region17
  $region16: #{ann_forward.1} parent=0 // pred_region
    _
  $region17: #{ann_forward.1} parent=0 // pred_fallthru
    _
  // Predicated region
  $region18: #{ann_forward.1} parent=0 // pred_check
    _
  $region19: #{ann_forward.1} parent=0 // pred_check_branch
    %23 = sbr.rel (0) target = $region21
  $region20: #{ann_forward.1} parent=0 // pred_region
    _
  $region21: #{ann_forward.1} parent=0 // pred_fallthru
    _
  // Predicated region
  $region22: #{ann_forward.1} parent=0 // pred_check
    _
  $region23: #{ann_forward.1} parent=0 // pred_check_branch
    %25 = sbr.rel (0) target = $region25
  $region24: #{ann_forward.1} parent=0 // pred_region
    _
  $region25: #{ann_forward.1} parent=0 // pred_fallthru
    _
  // Predicated region
  $region26: #{ann_forward.1} parent=0 // pred_check
    _
  $region27: #{ann_forward.1} parent=0 // pred_check_branch
    %27 = sbr.rel (0) target = $region29
  $region28: #{ann_forward.1} parent=0 // pred_region
    _
  $region29: #{ann_forward.1} parent=0 // pred_fallthru
    _
  %v29 = vld [vmem:[%s0] sm:$0xff]
  %v30 = vpack.c.bf16 %v29, %v29
  %v31 = vld [vmem:[%s1] sm:$0xf]
  %v32 = vld [vmem:[%s1 + $0x4] sm:$0xf]
  %v33 = vld [vmem:[%s1 + $0x8] sm:$0xf]
  %v34 = vld [vmem:[%s1 + $0xc] sm:$0xf]
  %v35 = vld [vmem:[%s2] sm:$0xff]
  %v36 = vld [vmem:[%s2 + $0x8] sm:$0xff]
  %v37 = vld [vmem:[%s2 + $0x10] sm:$0xff]
  %v38 = vld [vmem:[%s2 + $0x18] sm:$0xff]
  %40 = vset.pattern.permute.xlu0 0
  %41 = vperm.xlu0 %40, %v35
  %v42 = vpop.permute.xlu0 %41
  %45 = vset.pattern.permute.xlu0 0
  %46 = vperm.xlu0 %45, %v36
  %v47 = vpop.permute.xlu0 %46
  %50 = vset.pattern.permute.xlu0 0
  %51 = vperm.xlu0 %50, %v37
  %v52 = vpop.permute.xlu0 %51
  %55 = vset.pattern.permute.xlu0 0
  %56 = vperm.xlu0 %55, %v38
  %v57 = vpop.permute.xlu0 %56
  %v63 = vunpack.c.l.b16 %v31
  %v64 = vunpack.c.l.b16 %v32
  %v65 = vunpack.c.l.b16 %v33
  %v66 = vunpack.c.l.b16 %v34
  %v67 = vpack.c.b16 %v64, %v63
  %v68 = vpack.c.b16 %v66, %v65
  %vm69 = vcmask 64512
  %v71 = vsel %vm69, %v67, 0
  %v74 = vsel %vm69, %v68, 0
  %vm76 = vcmask 1043456
  %v78 = vsel %vm76, %v30, 0
  %80 = vmatpush.bf16.msra.mxu0 0
  %81 = vmatpush.bf16.msra.mxu0 0
  %82 = vmatpush.bf16.msra.mxu0 0
  %83 = vmatpush.bf16.msra.mxu0 0
  %84 = vmatpush.bf16.msra.mxu0 0
  %85 = vmatpush.bf16.msra.mxu0 0
  %86 = vmatpush.bf16.msra.mxu0 0
  %87 = vmatpush.bf16.msra.mxu0 %v78
  %88 = vmatmul.bf16.gmra.mxu0 %v71
  %v89 = vpop.f32.mrf.mxu0
  %v90 = vadd.f32 %v42, %v89
  %v91 = vpop.f32.mrf.mxu0
  %v92 = vadd.f32 %v47, %v91
  %93 = vmatmul.bf16.gmra.mxu0 %v74
  %v94 = vpop.f32.mrf.mxu0
  %v95 = vadd.f32 %v52, %v94
  %v96 = vpop.f32.mrf.mxu0
  %v97 = vadd.f32 %v57, %v96
  %98 = vdwg.mxu0
  %v99 = vtanh.pop %v90
  %v100 = vtanh.pop %v92
  %v101 = vtanh.pop %v95
  %v102 = vtanh.pop %v97
  %v103 = vld [vmem:[%s3] sm:$0xf]
  %v104 = vld [vmem:[%s3 + $0x4] sm:$0xf]
  %v105 = vld [vmem:[%s3 + $0x8] sm:$0xf]
  %v106 = vld [vmem:[%s3 + $0xc] sm:$0xf]
  %v107 = vpack.c.bf16 %v100, %v99
  %v108 = vpack.c.bf16 %v102, %v101
  %v109 = vld [vmem:[%s4] sm:$0xff]
  %v110 = vld [vmem:[%s4 + $0x8] sm:$0xff]
  %v111 = vld [vmem:[%s4 + $0x10] sm:$0xff]
  %v112 = vld [vmem:[%s4 + $0x18] sm:$0xff]
  %114 = vset.pattern.permute.xlu0 0
  %115 = vperm.xlu0 %114, %v109
  %v116 = vpop.permute.xlu0 %115
  %119 = vset.pattern.permute.xlu0 0
  %120 = vperm.xlu0 %119, %v110
  %v121 = vpop.permute.xlu0 %120
  %124 = vset.pattern.permute.xlu0 0
  %125 = vperm.xlu0 %124, %v111
  %v126 = vpop.permute.xlu0 %125
  %129 = vset.pattern.permute.xlu0 0
  %130 = vperm.xlu0 %129, %v112
  %v131 = vpop.permute.xlu0 %130
  %v137 = vunpack.c.l.b16 %v103
  %v138 = vunpack.c.l.b16 %v104
  %v139 = vunpack.c.l.b16 %v105
  %v140 = vunpack.c.l.b16 %v106
  %v141 = vpack.c.b16 %v138, %v137
  %v142 = vpack.c.b16 %v140, %v139
  %vm143 = vcmask 261120
  %v145 = vsel %vm143, %v141, 0
  %v148 = vsel %vm143, %v142, 0
  %150 = vmatpush.bf16.msra.mxu0 0
  %151 = vmatpush.bf16.msra.mxu0 0
  %152 = vmatpush.bf16.msra.mxu0 0
  %153 = vmatpush.bf16.msra.mxu0 0
  %154 = vmatpush.bf16.msra.mxu0 0
  %155 = vmatpush.bf16.msra.mxu0 0
  %156 = vmatpush.bf16.msra.mxu0 %v108
  %157 = vmatpush.bf16.msra.mxu0 %v107
  %158 = vmatmul.bf16.gmra.mxu0 %v145
  %v159 = vpop.f32.mrf.mxu0
  %v160 = vadd.f32 %v116, %v159
  %v161 = vpop.f32.mrf.mxu0
  %v162 = vadd.f32 %v121, %v161
  %163 = vmatmul.bf16.gmra.mxu0 %v148
  %v164 = vpop.f32.mrf.mxu0
  %v165 = vadd.f32 %v126, %v164
  %v166 = vpop.f32.mrf.mxu0
  %v167 = vadd.f32 %v131, %v166
  %168 = vdwg.mxu0
  %v169 = vtanh.pop %v160
  %v170 = vtanh.pop %v162
  %v171 = vtanh.pop %v165
  %v172 = vtanh.pop %v167
  %s173 = scalar_lea.vmem %s3, 16
  %v174 = vld [vmem:[%s173] sm:$0xf]
  %v175 = vld [vmem:[%s173 + $0x4] sm:$0xf]
  %v176 = vld [vmem:[%s173 + $0x8] sm:$0xf]
  %v177 = vld [vmem:[%s173 + $0xc] sm:$0xf]
  %v178 = vpack.c.bf16 %v170, %v169
  %v179 = vpack.c.bf16 %v172, %v171
  %s180 = scalar_lea.vmem %s4, 32
  %v181 = vld [vmem:[%s180] sm:$0xff]
  %v182 = vld [vmem:[%s180 + $0x8] sm:$0xff]
  %v183 = vld [vmem:[%s180 + $0x10] sm:$0xff]
  %v184 = vld [vmem:[%s180 + $0x18] sm:$0xff]
  %186 = vset.pattern.permute.xlu0 0
  %187 = vperm.xlu0 %186, %v181
  %v188 = vpop.permute.xlu0 %187
  %191 = vset.pattern.permute.xlu0 0
  %192 = vperm.xlu0 %191, %v182
  %v193 = vpop.permute.xlu0 %192
  %196 = vset.pattern.permute.xlu0 0
  %197 = vperm.xlu0 %196, %v183
  %v198 = vpop.permute.xlu0 %197
  %201 = vset.pattern.permute.xlu0 0
  %202 = vperm.xlu0 %201, %v184
  %v203 = vpop.permute.xlu0 %202
  %v209 = vunpack.c.l.b16 %v174
  %v210 = vunpack.c.l.b16 %v175
  %v211 = vunpack.c.l.b16 %v176
  %v212 = vunpack.c.l.b16 %v177
  %v213 = vpack.c.b16 %v210, %v209
  %v214 = vpack.c.b16 %v212, %v211
  %v216 = vsel %vm143, %v213, 0
  %v219 = vsel %vm143, %v214, 0
  %221 = vmatpush.bf16.msra.mxu0 0
  %222 = vmatpush.bf16.msra.mxu0 0
  %223 = vmatpush.bf16.msra.mxu0 0
  %224 = vmatpush.bf16.msra.mxu0 0
  %225 = vmatpush.bf16.msra.mxu0 0
  %226 = vmatpush.bf16.msra.mxu0 0
  %227 = vmatpush.bf16.msra.mxu0 %v179
  %228 = vmatpush.bf16.msra.mxu0 %v178
  %229 = vmatmul.bf16.gmra.mxu0 %v216
  %v230 = vpop.f32.mrf.mxu0
  %v231 = vadd.f32 %v188, %v230
  %v232 = vpop.f32.mrf.mxu0
  %v233 = vadd.f32 %v193, %v232
  %234 = vmatmul.bf16.gmra.mxu0 %v219
  %v235 = vpop.f32.mrf.mxu0
  %v236 = vadd.f32 %v198, %v235
  %v237 = vpop.f32.mrf.mxu0
  %v238 = vadd.f32 %v203, %v237
  %239 = vdwg.mxu0
  %v240 = vtanh.pop %v231
  %v241 = vtanh.pop %v233
  %v242 = vtanh.pop %v236
  %v243 = vtanh.pop %v238
  %s244 = scalar_lea.vmem %s3, 32
  %v245 = vld [vmem:[%s244] sm:$0xf]
  %v246 = vld [vmem:[%s244 + $0x4] sm:$0xf]
  %v247 = vld [vmem:[%s244 + $0x8] sm:$0xf]
  %v248 = vld [vmem:[%s244 + $0xc] sm:$0xf]
  %v249 = vpack.c.bf16 %v241, %v240
  %v250 = vpack.c.bf16 %v243, %v242
  %s251 = scalar_lea.vmem %s4, 64
  %v252 = vld [vmem:[%s251] sm:$0xff]
  %v253 = vld [vmem:[%s251 + $0x8] sm:$0xff]
  %v254 = vld [vmem:[%s251 + $0x10] sm:$0xff]
  %v255 = vld [vmem:[%s251 + $0x18] sm:$0xff]
  %257 = vset.pattern.permute.xlu0 0
  %258 = vperm.xlu0 %257, %v252
  %v259 = vpop.permute.xlu0 %258
  %262 = vset.pattern.permute.xlu0 0
  %263 = vperm.xlu0 %262, %v253
  %v264 = vpop.permute.xlu0 %263
  %267 = vset.pattern.permute.xlu0 0
  %268 = vperm.xlu0 %267, %v254
  %v269 = vpop.permute.xlu0 %268
  %272 = vset.pattern.permute.xlu0 0
  %273 = vperm.xlu0 %272, %v255
  %v274 = vpop.permute.xlu0 %273
  %v280 = vunpack.c.l.b16 %v245
  %v281 = vunpack.c.l.b16 %v246
  %v282 = vunpack.c.l.b16 %v247
  %v283 = vunpack.c.l.b16 %v248
  %v284 = vpack.c.b16 %v281, %v280
  %v285 = vpack.c.b16 %v283, %v282
  %v287 = vsel %vm143, %v284, 0
  %v290 = vsel %vm143, %v285, 0
  %292 = vmatpush.bf16.msra.mxu0 0
  %293 = vmatpush.bf16.msra.mxu0 0
  %294 = vmatpush.bf16.msra.mxu0 0
  %295 = vmatpush.bf16.msra.mxu0 0
  %296 = vmatpush.bf16.msra.mxu0 0
  %297 = vmatpush.bf16.msra.mxu0 0
  %298 = vmatpush.bf16.msra.mxu0 %v250
  %299 = vmatpush.bf16.msra.mxu0 %v249
  %300 = vmatmul.bf16.gmra.mxu0 %v287
  %v301 = vpop.f32.mrf.mxu0
  %v302 = vadd.f32 %v259, %v301
  %v303 = vpop.f32.mrf.mxu0
  %v304 = vadd.f32 %v264, %v303
  %305 = vmatmul.bf16.gmra.mxu0 %v290
  %v306 = vpop.f32.mrf.mxu0
  %v307 = vadd.f32 %v269, %v306
  %v308 = vpop.f32.mrf.mxu0
  %v309 = vadd.f32 %v274, %v308
  %310 = vdwg.mxu0
  %v311 = vtanh.pop %v302
  %v312 = vtanh.pop %v304
  %v313 = vtanh.pop %v307
  %v314 = vtanh.pop %v309
  %s315 = scalar_lea.vmem %s3, 48
  %v316 = vld [vmem:[%s315] sm:$0xf]
  %v317 = vld [vmem:[%s315 + $0x4] sm:$0xf]
  %v318 = vld [vmem:[%s315 + $0x8] sm:$0xf]
  %v319 = vld [vmem:[%s315 + $0xc] sm:$0xf]
  %v320 = vpack.c.bf16 %v312, %v311
  %v321 = vpack.c.bf16 %v314, %v313
  %s322 = scalar_lea.vmem %s4, 96
  %v323 = vld [vmem:[%s322] sm:$0xff]
  %v324 = vld [vmem:[%s322 + $0x8] sm:$0xff]
  %v325 = vld [vmem:[%s322 + $0x10] sm:$0xff]
  %v326 = vld [vmem:[%s322 + $0x18] sm:$0xff]
  %328 = vset.pattern.permute.xlu0 0
  %329 = vperm.xlu0 %328, %v323
  %v330 = vpop.permute.xlu0 %329
  %333 = vset.pattern.permute.xlu0 0
  %334 = vperm.xlu0 %333, %v324
  %v335 = vpop.permute.xlu0 %334
  %338 = vset.pattern.permute.xlu0 0
  %339 = vperm.xlu0 %338, %v325
  %v340 = vpop.permute.xlu0 %339
  %343 = vset.pattern.permute.xlu0 0
  %344 = vperm.xlu0 %343, %v326
  %v345 = vpop.permute.xlu0 %344
  %v351 = vunpack.c.l.b16 %v316
  %v352 = vunpack.c.l.b16 %v317
  %v353 = vunpack.c.l.b16 %v318
  %v354 = vunpack.c.l.b16 %v319
  %v355 = vpack.c.b16 %v352, %v351
  %v356 = vpack.c.b16 %v354, %v353
  %v358 = vsel %vm143, %v355, 0
  %v361 = vsel %vm143, %v356, 0
  %363 = vmatpush.bf16.msra.mxu0 0
  %364 = vmatpush.bf16.msra.mxu0 0
  %365 = vmatpush.bf16.msra.mxu0 0
  %366 = vmatpush.bf16.msra.mxu0 0
  %367 = vmatpush.bf16.msra.mxu0 0
  %368 = vmatpush.bf16.msra.mxu0 0
  %369 = vmatpush.bf16.msra.mxu0 %v321
  %370 = vmatpush.bf16.msra.mxu0 %v320
  %371 = vmatmul.bf16.gmra.mxu0 %v358
  %v372 = vpop.f32.mrf.mxu0
  %v373 = vadd.f32 %v330, %v372
  %v374 = vpop.f32.mrf.mxu0
  %v375 = vadd.f32 %v335, %v374
  %376 = vmatmul.bf16.gmra.mxu0 %v361
  %v377 = vpop.f32.mrf.mxu0
  %v378 = vadd.f32 %v340, %v377
  %v379 = vpop.f32.mrf.mxu0
  %v380 = vadd.f32 %v345, %v379
  %381 = vdwg.mxu0
  %v382 = vtanh.pop %v373
  %v383 = vtanh.pop %v375
  %v384 = vtanh.pop %v378
  %v385 = vtanh.pop %v380
  %s386 = scalar_lea.vmem %s3, 64
  %v387 = vld [vmem:[%s386] sm:$0xf]
  %v388 = vld [vmem:[%s386 + $0x4] sm:$0xf]
  %v389 = vld [vmem:[%s386 + $0x8] sm:$0xf]
  %v390 = vld [vmem:[%s386 + $0xc] sm:$0xf]
  %v391 = vpack.c.bf16 %v383, %v382
  %v392 = vpack.c.bf16 %v385, %v384
  %s393 = scalar_lea.vmem %s4, 128
  %v394 = vld [vmem:[%s393] sm:$0xff]
  %v395 = vld [vmem:[%s393 + $0x8] sm:$0xff]
  %v396 = vld [vmem:[%s393 + $0x10] sm:$0xff]
  %v397 = vld [vmem:[%s393 + $0x18] sm:$0xff]
  %399 = vset.pattern.permute.xlu0 0
  %400 = vperm.xlu0 %399, %v394
  %v401 = vpop.permute.xlu0 %400
  %404 = vset.pattern.permute.xlu0 0
  %405 = vperm.xlu0 %404, %v395
  %v406 = vpop.permute.xlu0 %405
  %409 = vset.pattern.permute.xlu0 0
  %410 = vperm.xlu0 %409, %v396
  %v411 = vpop.permute.xlu0 %410
  %414 = vset.pattern.permute.xlu0 0
  %415 = vperm.xlu0 %414, %v397
  %v416 = vpop.permute.xlu0 %415
  %v422 = vunpack.c.l.b16 %v387
  %v423 = vunpack.c.l.b16 %v388
  %v424 = vunpack.c.l.b16 %v389
  %v425 = vunpack.c.l.b16 %v390
  %v426 = vpack.c.b16 %v423, %v422
  %v427 = vpack.c.b16 %v425, %v424
  %v429 = vsel %vm143, %v426, 0
  %v432 = vsel %vm143, %v427, 0
  %434 = vmatpush.bf16.msra.mxu0 0
  %435 = vmatpush.bf16.msra.mxu0 0
  %436 = vmatpush.bf16.msra.mxu0 0
  %437 = vmatpush.bf16.msra.mxu0 0
  %438 = vmatpush.bf16.msra.mxu0 0
  %439 = vmatpush.bf16.msra.mxu0 0
  %440 = vmatpush.bf16.msra.mxu0 %v392
  %441 = vmatpush.bf16.msra.mxu0 %v391
  %442 = vmatmul.bf16.gmra.mxu0 %v429
  %v443 = vpop.f32.mrf.mxu0
  %v444 = vadd.f32 %v401, %v443
  %v445 = vpop.f32.mrf.mxu0
  %v446 = vadd.f32 %v406, %v445
  %447 = vmatmul.bf16.gmra.mxu0 %v432
  %v448 = vpop.f32.mrf.mxu0
  %v449 = vadd.f32 %v411, %v448
  %v450 = vpop.f32.mrf.mxu0
  %v451 = vadd.f32 %v416, %v450
  %452 = vdwg.mxu0
  %v453 = vtanh.pop %v444
  %v454 = vtanh.pop %v446
  %v455 = vtanh.pop %v449
  %v456 = vtanh.pop %v451
  %s457 = scalar_lea.vmem %s3, 80
  %v458 = vld [vmem:[%s457] sm:$0xf]
  %v459 = vld [vmem:[%s457 + $0x4] sm:$0xf]
  %v460 = vld [vmem:[%s457 + $0x8] sm:$0xf]
  %v461 = vld [vmem:[%s457 + $0xc] sm:$0xf]
  %v462 = vpack.c.bf16 %v454, %v453
  %v463 = vpack.c.bf16 %v456, %v455
  %s464 = scalar_lea.vmem %s4, 160
  %v465 = vld [vmem:[%s464] sm:$0xff]
  %v466 = vld [vmem:[%s464 + $0x8] sm:$0xff]
  %v467 = vld [vmem:[%s464 + $0x10] sm:$0xff]
  %v468 = vld [vmem:[%s464 + $0x18] sm:$0xff]
  %470 = vset.pattern.permute.xlu0 0
  %471 = vperm.xlu0 %470, %v465
  %v472 = vpop.permute.xlu0 %471
  %475 = vset.pattern.permute.xlu0 0
  %476 = vperm.xlu0 %475, %v466
  %v477 = vpop.permute.xlu0 %476
  %480 = vset.pattern.permute.xlu0 0
  %481 = vperm.xlu0 %480, %v467
  %v482 = vpop.permute.xlu0 %481
  %485 = vset.pattern.permute.xlu0 0
  %486 = vperm.xlu0 %485, %v468
  %v487 = vpop.permute.xlu0 %486
  %v493 = vunpack.c.l.b16 %v458
  %v494 = vunpack.c.l.b16 %v459
  %v495 = vunpack.c.l.b16 %v460
  %v496 = vunpack.c.l.b16 %v461
  %v497 = vpack.c.b16 %v494, %v493
  %v498 = vpack.c.b16 %v496, %v495
  %v500 = vsel %vm143, %v497, 0
  %v503 = vsel %vm143, %v498, 0
  %505 = vmatpush.bf16.msra.mxu0 0
  %506 = vmatpush.bf16.msra.mxu0 0
  %507 = vmatpush.bf16.msra.mxu0 0
  %508 = vmatpush.bf16.msra.mxu0 0
  %509 = vmatpush.bf16.msra.mxu0 0
  %510 = vmatpush.bf16.msra.mxu0 0
  %511 = vmatpush.bf16.msra.mxu0 %v463
  %512 = vmatpush.bf16.msra.mxu0 %v462
  %513 = vmatmul.bf16.gmra.mxu0 %v500
  %v514 = vpop.f32.mrf.mxu0
  %v515 = vadd.f32 %v472, %v514
  %v516 = vpop.f32.mrf.mxu0
  %v517 = vadd.f32 %v477, %v516
  %518 = vmatmul.bf16.gmra.mxu0 %v503
  %v519 = vpop.f32.mrf.mxu0
  %v520 = vadd.f32 %v482, %v519
  %v521 = vpop.f32.mrf.mxu0
  %v522 = vadd.f32 %v487, %v521
  %523 = vdwg.mxu0
  %v524 = vtanh.pop %v515
  %v525 = vtanh.pop %v517
  %v526 = vtanh.pop %v520
  %v527 = vtanh.pop %v522
  %v528 = vld [vmem:[%s5] sm:$0xf]
  %v529 = vpack.c.bf16 %v525, %v524
  %v530 = vpack.c.bf16 %v527, %v526
  %v532 = vsel %vm143, %v528, 0
  %534 = vmatpush.bf16.msra.mxu0 0
  %535 = vmatpush.bf16.msra.mxu0 0
  %536 = vmatpush.bf16.msra.mxu0 0
  %537 = vmatpush.bf16.msra.mxu0 0
  %538 = vmatpush.bf16.msra.mxu0 0
  %539 = vmatpush.bf16.msra.mxu0 0
  %540 = vmatpush.bf16.msra.mxu0 %v530
  %541 = vmatpush.bf16.msra.mxu0 %v529
  %542 = vmatmul.bf16.gmra.mxu0 %v532
  %v543 = vpop.f32.mrf.mxu0
  %v544 = vadd.f32 0.0, %v543
  %v545 = vpop.f32.mrf.mxu0
  %546 = vdwg.mxu0
  %v547 = vld [vmem:[#allocation2] sm:$0x1]
  %549 = vset.pattern.permute.xlu0 0
  %550 = vperm.xlu0 %549, %v547
  %v551 = vpop.permute.xlu0 %550
  %v553 = vperm.slane %v551, 0
  %v554 = vadd.f32 %v544, %v553
  %555 = vst [vmem:[%s7] sm:$0x1] %v554
  // Predicated region
  $region30: #{ann_forward.1} parent=0 // pred_check
    _
  $region31: #{ann_forward.1} parent=0 // pred_check_branch
    %557 = sbr.rel (0) target = $region33
  $region32: #{ann_forward.1} parent=0 // pred_region
    _
  $region33: #{ann_forward.1} parent=0 // pred_fallthru
    _
  // Predicated region
  $region34: #{ann_forward.1} parent=0 // pred_check
    _
  $region35: #{ann_forward.1} parent=0 // pred_check_branch
    %559 = sbr.rel (0) target = $region37
  $region36: #{ann_forward.1} parent=0 // pred_region
    _
  $region37: #{ann_forward.1} parent=0 // pred_fallthru
    _

</llo_original>
